<compile_context>
chip_gen: v7x
topology: tpu7x:2x2x1
jax: 0.10.0
libtpu: 0.0.40
codegen_flags: <defaults>
</compile_context>

<pallas_src>
import jax
import jax.numpy as jnp
import numpy as np
from jax.experimental import pallas as pl
from jax.experimental.pallas import tpu as pltpu

BOS_TOKEN = 0
EOS_TOKEN = 2


# --------------------------------------------------------------------------
# Kernels
# --------------------------------------------------------------------------
def _gather_kernel(tab_ref, tok_ref, src_ref, tgt_ref):
    """Primary kernel: vectorized vocab gather.

    tab_ref : VMEM (1, V)      int32  -- vocab mapping table (resident)
    tok_ref : VMEM (TB, L)     int32  -- raw token ids (batch tile)
    src_ref : VMEM (TB, S + 2) int32
    tgt_ref : VMEM (TB, S + 2) int32
    """
    TB = src_ref.shape[0]
    S = src_ref.shape[1] - 2
    V = tab_ref.shape[1]

    # Only columns 0..S are consumed by src/tgt -> slice the ref (no wasted
    # lookup work on the remaining L - (S+1) columns).
    toks = tok_ref[:, :S + 1]                                    # (TB, S+1)
    # No hardware bounds check on TPU gathers: clamp ids into [0, V).
    toks = jnp.clip(toks, 0, V - 1)

    # VocabTransform as a single lane-gather.  Operand and indices are given
    # the same (TB, V) shape -- the take_along_axis pattern Mosaic lowers to
    # tpu.dynamic_gather.  (Wrapper only selects this path when V >= S+1.)
    pad = V - (S + 1)
    if pad > 0:
        idx = jnp.concatenate(
            [toks, jnp.zeros((TB, pad), jnp.int32)], axis=1)     # (TB, V)
    else:
        idx = toks
    tab = jnp.broadcast_to(tab_ref[...], (TB, V))                # (TB, V)
    ids = jnp.take_along_axis(
        tab, idx, axis=1, mode="promise_in_bounds")[:, :S + 1]   # (TB, S+1)

    # sample_sequences + AddToken(BOS) + AddToken(EOS), fused into exactly one
    # unmasked full-tile store per output.
    bos = jnp.full((TB, 1), BOS_TOKEN, jnp.int32)
    eos = jnp.full((TB, 1), EOS_TOKEN, jnp.int32)
    src_ref[...] = jnp.concatenate([bos, ids[:, 0:S], eos], axis=1)
    tgt_ref[...] = jnp.concatenate([bos, ids[:, 1:S + 1], eos], axis=1)


def _scan_kernel(tab_ref, tok_ref, src_ref, tgt_ref):
    """Fallback kernel (small V only): fully unrolled select-scan lookup.

    tab_ref : SMEM (V,)        int32  -- scalar-prefetched vocab table
    tok_ref : VMEM (TB, L)     int32
    src_ref : VMEM (TB, S + 2) int32
    tgt_ref : VMEM (TB, S + 2) int32
    """
    TB = src_ref.shape[0]
    S = src_ref.shape[1] - 2
    V = tab_ref.shape[0]

    toks = tok_ref[:, :S + 1]                                    # (TB, S+1)
    ids = jnp.zeros_like(toks)
    # Static trip count -> fully unrolled at trace time (per review: if the
    # loop must stay for tiny V, at least unroll it).
    for v in range(V):
        ids = jnp.where(toks == v, tab_ref[v], ids)

    bos = jnp.full((TB, 1), BOS_TOKEN, jnp.int32)
    eos = jnp.full((TB, 1), EOS_TOKEN, jnp.int32)
    src_ref[...] = jnp.concatenate([bos, ids[:, 0:S], eos], axis=1)
    tgt_ref[...] = jnp.concatenate([bos, ids[:, 1:S + 1], eos], axis=1)


# --------------------------------------------------------------------------
# pallas_call builders
# --------------------------------------------------------------------------
def _gather_call(B, L, V, S, TB):
    out_len = S + 2
    return pl.pallas_call(
        _gather_kernel,
        out_shape=(
            jax.ShapeDtypeStruct((B, out_len), jnp.int32),
            jax.ShapeDtypeStruct((B, out_len), jnp.int32),
        ),
        grid=(pl.cdiv(B, TB),),
        in_specs=[
            pl.BlockSpec((1, V), lambda i: (0, 0)),      # table: VMEM resident
            pl.BlockSpec((TB, L), lambda i: (i, 0)),     # token batch tile
        ],
        out_specs=(
            pl.BlockSpec((TB, out_len), lambda i: (i, 0)),
            pl.BlockSpec((TB, out_len), lambda i: (i, 0)),
        ),
        compiler_params=pltpu.CompilerParams(
            dimension_semantics=("parallel",)),          # v7x: shard over TCs
    )


def _scan_call(B, L, V, S, TB):
    out_len = S + 2
    grid_spec = pltpu.PrefetchScalarGridSpec(
        num_scalar_prefetch=1,                           # small-V table in SMEM
        grid=(pl.cdiv(B, TB),),
        in_specs=[pl.BlockSpec((TB, L), lambda i, tab: (i, 0))],
        out_specs=[
            pl.BlockSpec((TB, out_len), lambda i, tab: (i, 0)),
            pl.BlockSpec((TB, out_len), lambda i, tab: (i, 0)),
        ],
    )
    return pl.pallas_call(
        _scan_kernel,
        out_shape=(
            jax.ShapeDtypeStruct((B, out_len), jnp.int32),
            jax.ShapeDtypeStruct((B, out_len), jnp.int32),
        ),
        grid_spec=grid_spec,
        compiler_params=pltpu.CompilerParams(
            dimension_semantics=("parallel",)),
    )


# --------------------------------------------------------------------------
# Wrapper
# --------------------------------------------------------------------------
def preprocess(raw_tokens, vocab_table, seq_length, *, block_b=256):
    """(B, L) int32 raw tokens + (V,) int32 table -> (src, tgt), each (B, S+2).

    Batch is tiled in blocks of `block_b` rows (double-buffered by Pallas;
    block_b sized to stay well under the 32 MiB scoped-VMEM default even on
    v7x's 64 MiB VMEM).
    """
    B, L = raw_tokens.shape
    V = vocab_table.shape[0]
    assert L >= seq_length + 1, "need at least seq_length + 1 raw tokens"
    TB = max(1, min(block_b, B))

    raw_tokens = raw_tokens.astype(jnp.int32)
    vocab_table = vocab_table.astype(jnp.int32)

    if V >= seq_length + 1:
        try:
            call = _gather_call(B, L, V, seq_length, TB)
            out = call(vocab_table.reshape(1, V), raw_tokens)
            jax.block_until_ready(out)
            return out
        except Exception:
            # TODO(synk): Mosaic dynamic-gather lowering support varies across
            # jax/libtpu versions; fall back to the unrolled select-scan
            # (intended for small vocabularies only).
            pass

    call = _scan_call(B, L, V, seq_length, TB)
    out = call(vocab_table, raw_tokens)
    jax.block_until_ready(out)
    return out


# --------------------------------------------------------------------------
# Demo / correctness check
# --------------------------------------------------------------------------
if __name__ == "__main__":
    key = jax.random.PRNGKey(0)
    k_tok, k_tab = jax.random.split(key)

    B = 2            # batch
    S = 8            # seq_length
    V = 64           # synthetic vocab size
    L = 16           # raw token stream length per example

    # Deterministic synthetic inputs (stand-in for tokenizer output).
    raw_tokens = jax.random.randint(k_tok, (B, L), 0, V, dtype=jnp.int32)
    # Deterministic synthetic vocab mapping (stand-in for torchtext vocab).
    vocab_table = jax.random.permutation(
        k_tab, jnp.arange(V, dtype=jnp.int32))

    src, tgt = preprocess(raw_tokens, vocab_table, S)
    jax.block_until_ready((src, tgt))

    # Reference check (plain numpy).
    ids_ref = np.asarray(vocab_table)[np.asarray(raw_tokens)]
    src_ref = np.concatenate(
        [np.full((B, 1), BOS_TOKEN), ids_ref[:, :S],
         np.full((B, 1), EOS_TOKEN)], axis=1).astype(np.int32)
    tgt_ref = np.concatenate(
        [np.full((B, 1), BOS_TOKEN), ids_ref[:, 1:S + 1],
         np.full((B, 1), EOS_TOKEN)], axis=1).astype(np.int32)
    np.testing.assert_array_equal(np.asarray(src), src_ref)
    np.testing.assert_array_equal(np.asarray(tgt), tgt_ref)

    # TODO(synk): string tokenization and the string->id vocab dict have no
    # numeric/Pallas equivalent; the kernel starts from integer raw token ids.
    print("KERNEL_OK")
</pallas_src>

<mosaic_0001>
module attributes {stable_mosaic.version = 11 : i64} {
  func.func @_gather_kernel(%arg0: i32, %arg1: memref<1x64xi32, #tpu.memory_space<vmem>>, %arg2: memref<2x16xi32, #tpu.memory_space<vmem>>, %arg3: memref<2x10xi32, #tpu.memory_space<vmem>>, %arg4: memref<2x10xi32, #tpu.memory_space<vmem>>) attributes {dimension_semantics = [#tpu.dimension_semantics<parallel>], iteration_bounds = array<i64: 1>, scalar_prefetch = 0 : i64, scratch_operands = 0 : i64, tpu.core_type = #tpu.core_type<tc>, window_params = [{pipeline_mode = #tpu.pipeline_mode<synchronous>, transform_indices = @transform_0, window_bounds = array<i64: 1, 64>}, {transform_indices = @transform_1, window_bounds = array<i64: 2, 16>}, {transform_indices = @transform_2, window_bounds = array<i64: 2, 10>}, {transform_indices = @transform_3, window_bounds = array<i64: 2, 10>}]} {
    %c0 = arith.constant 0 : index
    %c0_0 = arith.constant 0 : index
    %0 = vector.load %arg2[%c0, %c0_0] : memref<2x16xi32, #tpu.memory_space<vmem>>, vector<2x9xi32>
    %c0_i32 = arith.constant 0 : i32
    %c63_i32 = arith.constant 63 : i32
    %1 = vector.broadcast %c0_i32 : i32 to vector<2x9xi32>
    %2 = arith.maxsi %1, %0 : vector<2x9xi32>
    %3 = vector.broadcast %c63_i32 : i32 to vector<2x9xi32>
    %4 = arith.minsi %3, %2 : vector<2x9xi32>
    %c0_i32_1 = arith.constant 0 : i32
    %5 = vector.broadcast %c0_i32_1 : i32 to vector<2x55xi32>
    %6 = tpu.concatenate %4, %5 in 1 : vector<2x9xi32>, vector<2x55xi32> -> vector<2x64xi32>
    %c0_2 = arith.constant 0 : index
    %c0_3 = arith.constant 0 : index
    %7 = vector.load %arg1[%c0_2, %c0_3] : memref<1x64xi32, #tpu.memory_space<vmem>>, vector<1x64xi32>
    %8 = vector.shape_cast %7 : vector<1x64xi32> to vector<1x64xi32>
    %9 = vector.broadcast %8 : vector<1x64xi32> to vector<2x64xi32>
    %10 = vector.shape_cast %6 : vector<2x64xi32> to vector<2x64x1xi32>
    %11 = vector.shape_cast %10 : vector<2x64x1xi32> to vector<2x64xi32>
    %12 = tpu.dynamic_gather %9[%11] in [1] : vector<2x64xi32>, vector<2x64xi32> -> vector<2x64xi32>
    %13 = vector.extract_strided_slice %12 {offsets = [0, 0], sizes = [2, 9], strides = [1, 1]} : vector<2x64xi32> to vector<2x9xi32>
    %c0_i32_4 = arith.constant 0 : i32
    %14 = vector.broadcast %c0_i32_4 : i32 to vector<2x1xi32>
    %c2_i32 = arith.constant 2 : i32
    %15 = vector.broadcast %c2_i32 : i32 to vector<2x1xi32>
    %16 = vector.extract_strided_slice %13 {offsets = [0, 0], sizes = [2, 8], strides = [1, 1]} : vector<2x9xi32> to vector<2x8xi32>
    %17 = tpu.concatenate %14, %16, %15 in 1 : vector<2x1xi32>, vector<2x8xi32>, vector<2x1xi32> -> vector<2x10xi32>
    %c0_5 = arith.constant 0 : index
    %c0_6 = arith.constant 0 : index
    %18 = vector.load %arg3[%c0_5, %c0_6] : memref<2x10xi32, #tpu.memory_space<vmem>>, vector<2x10xi32>
    tpu.vector_store %arg3[%c0_5, %c0_6], %17 {strides = array<i32>} : memref<2x10xi32, #tpu.memory_space<vmem>>, vector<2x10xi32>,
    %19 = vector.extract_strided_slice %13 {offsets = [0, 1], sizes = [2, 8], strides = [1, 1]} : vector<2x9xi32> to vector<2x8xi32>
    %20 = tpu.concatenate %14, %19, %15 in 1 : vector<2x1xi32>, vector<2x8xi32>, vector<2x1xi32> -> vector<2x10xi32>
    %c0_7 = arith.constant 0 : index
    %c0_8 = arith.constant 0 : index
    %21 = vector.load %arg4[%c0_7, %c0_8] : memref<2x10xi32, #tpu.memory_space<vmem>>, vector<2x10xi32>
    tpu.vector_store %arg4[%c0_7, %c0_8], %20 {strides = array<i32>} : memref<2x10xi32, #tpu.memory_space<vmem>>, vector<2x10xi32>,
    return
  }
  func.func @transform_0(%arg0: i32) -> (i32, i32) {
    %c0_i32 = arith.constant 0 : i32
    %c0_i32_0 = arith.constant 0 : i32
    %c0_i32_1 = arith.constant 0 : i32
    return %c0_i32, %c0_i32_0 : i32, i32
  }
  func.func @transform_1(%arg0: i32) -> (i32, i32) {
    %c0_i32 = arith.constant 0 : i32
    %c0_i32_0 = arith.constant 0 : i32
    return %arg0, %c0_i32 : i32, i32
  }
  func.func @transform_2(%arg0: i32) -> (i32, i32) {
    %c0_i32 = arith.constant 0 : i32
    %c0_i32_0 = arith.constant 0 : i32
    return %arg0, %c0_i32 : i32, i32
  }
  func.func @transform_3(%arg0: i32) -> (i32, i32) {
    %c0_i32 = arith.constant 0 : i32
    %c0_i32_0 = arith.constant 0 : i32
    return %arg0, %c0_i32 : i32, i32
  }
}

module attributes {stable_mosaic.version = 11 : i64} {
  func.func @_scan_kernel(%arg0: i32, %arg1: memref<64xi32, #tpu.memory_space<smem>>, %arg2: memref<2x16xi32, #tpu.memory_space<vmem>>, %arg3: memref<2x10xi32, #tpu.memory_space<vmem>>, %arg4: memref<2x10xi32, #tpu.memory_space<vmem>>) attributes {dimension_semantics = [#tpu.dimension_semantics<parallel>], iteration_bounds = array<i64: 1>, scalar_prefetch = 1 : i64, scratch_operands = 0 : i64, tpu.core_type = #tpu.core_type<tc>, window_params = [{transform_indices = @transform_0, window_bounds = array<i64: 2, 16>}, {transform_indices = @transform_1, window_bounds = array<i64: 2, 10>}, {transform_indices = @transform_2, window_bounds = array<i64: 2, 10>}]} {
    %c0 = arith.constant 0 : index
    %c0_0 = arith.constant 0 : index
    %0 = vector.load %arg2[%c0, %c0_0] : memref<2x16xi32, #tpu.memory_space<vmem>>, vector<2x9xi32>
    %c0_i32 = arith.constant 0 : i32
    %1 = vector.broadcast %c0_i32 : i32 to vector<2x9xi32>
    %c0_i32_1 = arith.constant 0 : i32
    %2 = vector.broadcast %c0_i32_1 : i32 to vector<2x9xi32>
    %3 = arith.cmpi eq, %0, %2 : vector<2x9xi32>
    %c0_2 = arith.constant 0 : index
    %4 = memref.load %arg1[%c0_2] : memref<64xi32, #tpu.memory_space<smem>>
    %5 = vector.broadcast %4 : i32 to vector<2x9xi32>
    %6 = arith.select %3, %5, %1 : vector<2x9xi1>, vector<2x9xi32>
    %c1_i32 = arith.constant 1 : i32
    %7 = vector.broadcast %c1_i32 : i32 to vector<2x9xi32>
    %8 = arith.cmpi eq, %0, %7 : vector<2x9xi32>
    %c1 = arith.constant 1 : index
    %9 = memref.load %arg1[%c1] : memref<64xi32, #tpu.memory_space<smem>>
    %10 = vector.broadcast %9 : i32 to vector<2x9xi32>
    %11 = arith.select %8, %10, %6 : vector<2x9xi1>, vector<2x9xi32>
    %c2_i32 = arith.constant 2 : i32
    %12 = vector.broadcast %c2_i32 : i32 to vector<2x9xi32>
    %13 = arith.cmpi eq, %0, %12 : vector<2x9xi32>
    %c2 = arith.constant 2 : index
    %14 = memref.load %arg1[%c2] : memref<64xi32, #tpu.memory_space<smem>>
    %15 = vector.broadcast %14 : i32 to vector<2x9xi32>
    %16 = arith.select %13, %15, %11 : vector<2x9xi1>, vector<2x9xi32>
    %c3_i32 = arith.constant 3 : i32
    %17 = vector.broadcast %c3_i32 : i32 to vector<2x9xi32>
    %18 = arith.cmpi eq, %0, %17 : vector<2x9xi32>
    %c3 = arith.constant 3 : index
    %19 = memref.load %arg1[%c3] : memref<64xi32, #tpu.memory_space<smem>>
    %20 = vector.broadcast %19 : i32 to vector<2x9xi32>
    %21 = arith.select %18, %20, %16 : vector<2x9xi1>, vector<2x9xi32>
    %c4_i32 = arith.constant 4 : i32
    %22 = vector.broadcast %c4_i32 : i32 to vector<2x9xi32>
    %23 = arith.cmpi eq, %0, %22 : vector<2x9xi32>
    %c4 = arith.constant 4 : index
    %24 = memref.load %arg1[%c4] : memref<64xi32, #tpu.memory_space<smem>>
    %25 = vector.broadcast %24 : i32 to vector<2x9xi32>
    %26 = arith.select %23, %25, %21 : vector<2x9xi1>, vector<2x9xi32>
    %c5_i32 = arith.constant 5 : i32
    %27 = vector.broadcast %c5_i32 : i32 to vector<2x9xi32>
    %28 = arith.cmpi eq, %0, %27 : vector<2x9xi32>
    %c5 = arith.constant 5 : index
    %29 = memref.load %arg1[%c5] : memref<64xi32, #tpu.memory_space<smem>>
    %30 = vector.broadcast %29 : i32 to vector<2x9xi32>
    %31 = arith.select %28, %30, %26 : vector<2x9xi1>, vector<2x9xi32>
    %c6_i32 = arith.constant 6 : i32
    %32 = vector.broadcast %c6_i32 : i32 to vector<2x9xi32>
    %33 = arith.cmpi eq, %0, %32 : vector<2x9xi32>
    %c6 = arith.constant 6 : index
    %34 = memref.load %arg1[%c6] : memref<64xi32, #tpu.memory_space<smem>>
    %35 = vector.broadcast %34 : i32 to vector<2x9xi32>
    %36 = arith.select %33, %35, %31 : vector<2x9xi1>, vector<2x9xi32>
    %c7_i32 = arith.constant 7 : i32
    %37 = vector.broadcast %c7_i32 : i32 to vector<2x9xi32>
    %38 = arith.cmpi eq, %0, %37 : vector<2x9xi32>
    %c7 = arith.constant 7 : index
    %39 = memref.load %arg1[%c7] : memref<64xi32, #tpu.memory_space<smem>>
    %40 = vector.broadcast %39 : i32 to vector<2x9xi32>
    %41 = arith.select %38, %40, %36 : vector<2x9xi1>, vector<2x9xi32>
    %c8_i32 = arith.constant 8 : i32
    %42 = vector.broadcast %c8_i32 : i32 to vector<2x9xi32>
    %43 = arith.cmpi eq, %0, %42 : vector<2x9xi32>
    %c8 = arith.constant 8 : index
    %44 = memref.load %arg1[%c8] : memref<64xi32, #tpu.memory_space<smem>>
    %45 = vector.broadcast %44 : i32 to vector<2x9xi32>
    %46 = arith.select %43, %45, %41 : vector<2x9xi1>, vector<2x9xi32>
    %c9_i32 = arith.constant 9 : i32
    %47 = vector.broadcast %c9_i32 : i32 to vector<2x9xi32>
    %48 = arith.cmpi eq, %0, %47 : vector<2x9xi32>
    %c9 = arith.constant 9 : index
    %49 = memref.load %arg1[%c9] : memref<64xi32, #tpu.memory_space<smem>>
    %50 = vector.broadcast %49 : i32 to vector<2x9xi32>
    %51 = arith.select %48, %50, %46 : vector<2x9xi1>, vector<2x9xi32>
    %c10_i32 = arith.constant 10 : i32
    %52 = vector.broadcast %c10_i32 : i32 to vector<2x9xi32>
    %53 = arith.cmpi eq, %0, %52 : vector<2x9xi32>
    %c10 = arith.constant 10 : index
    %54 = memref.load %arg1[%c10] : memref<64xi32, #tpu.memory_space<smem>>
    %55 = vector.broadcast %54 : i32 to vector<2x9xi32>
    %56 = arith.select %53, %55, %51 : vector<2x9xi1>, vector<2x9xi32>
    %c11_i32 = arith.constant 11 : i32
    %57 = vector.broadcast %c11_i32 : i32 to vector<2x9xi32>
    %58 = arith.cmpi eq, %0, %57 : vector<2x9xi32>
    %c11 = arith.constant 11 : index
    %59 = memref.load %arg1[%c11] : memref<64xi32, #tpu.memory_space<smem>>
    %60 = vector.broadcast %59 : i32 to vector<2x9xi32>
    %61 = arith.select %58, %60, %56 : vector<2x9xi1>, vector<2x9xi32>
    %c12_i32 = arith.constant 12 : i32
    %62 = vector.broadcast %c12_i32 : i32 to vector<2x9xi32>
    %63 = arith.cmpi eq, %0, %62 : vector<2x9xi32>
    %c12 = arith.constant 12 : index
    %64 = memref.load %arg1[%c12] : memref<64xi32, #tpu.memory_space<smem>>
    %65 = vector.broadcast %64 : i32 to vector<2x9xi32>
    %66 = arith.select %63, %65, %61 : vector<2x9xi1>, vector<2x9xi32>
    %c13_i32 = arith.constant 13 : i32
    %67 = vector.broadcast %c13_i32 : i32 to vector<2x9xi32>
    %68 = arith.cmpi eq, %0, %67 : vector<2x9xi32>
    %c13 = arith.constant 13 : index
    %69 = memref.load %arg1[%c13] : memref<64xi32, #tpu.memory_space<smem>>
    %70 = vector.broadcast %69 : i32 to vector<2x9xi32>
    %71 = arith.select %68, %70, %66 : vector<2x9xi1>, vector<2x9xi32>
    %c14_i32 = arith.constant 14 : i32
    %72 = vector.broadcast %c14_i32 : i32 to vector<2x9xi32>
    %73 = arith.cmpi eq, %0, %72 : vector<2x9xi32>
    %c14 = arith.constant 14 : index
    %74 = memref.load %arg1[%c14] : memref<64xi32, #tpu.memory_space<smem>>
    %75 = vector.broadcast %74 : i32 to vector<2x9xi32>
    %76 = arith.select %73, %75, %71 : vector<2x9xi1>, vector<2x9xi32>
    %c15_i32 = arith.constant 15 : i32
    %77 = vector.broadcast %c15_i32 : i32 to vector<2x9xi32>
    %78 = arith.cmpi eq, %0, %77 : vector<2x9xi32>
    %c15 = arith.constant 15 : index
    %79 = memref.load %arg1[%c15] : memref<64xi32, #tpu.memory_space<smem>>
    %80 = vector.broadcast %79 : i32 to vector<2x9xi32>
    %81 = arith.select %78, %80, %76 : vector<2x9xi1>, vector<2x9xi32>
    %c16_i32 = arith.constant 16 : i32
    %82 = vector.broadcast %c16_i32 : i32 to vector<2x9xi32>
    %83 = arith.cmpi eq, %0, %82 : vector<2x9xi32>
    %c16 = arith.constant 16 : index
    %84 = memref.load %arg1[%c16] : memref<64xi32, #tpu.memory_space<smem>>
    %85 = vector.broadcast %84 : i32 to vector<2x9xi32>
    %86 = arith.select %83, %85, %81 : vector<2x9xi1>, vector<2x9xi32>
    %c17_i32 = arith.constant 17 : i32
    %87 = vector.broadcast %c17_i32 : i32 to vector<2x9xi32>
    %88 = arith.cmpi eq, %0, %87 : vector<2x9xi32>
    %c17 = arith.constant 17 : index
    %89 = memref.load %arg1[%c17] : memref<64xi32, #tpu.memory_space<smem>>
    %90 = vector.broadcast %89 : i32 to vector<2x9xi32>
    %91 = arith.select %88, %90, %86 : vector<2x9xi1>, vector<2x9xi32>
    %c18_i32 = arith.constant 18 : i32
    %92 = vector.broadcast %c18_i32 : i32 to vector<2x9xi32>
    %93 = arith.cmpi eq, %0, %92 : vector<2x9xi32>
    %c18 = arith.constant 18 : index
    %94 = memref.load %arg1[%c18] : memref<64xi32, #tpu.memory_space<smem>>
    %95 = vector.broadcast %94 : i32 to vector<2x9xi32>
    %96 = arith.select %93, %95, %91 : vector<2x9xi1>, vector<2x9xi32>
    %c19_i32 = arith.constant 19 : i32
    %97 = vector.broadcast %c19_i32 : i32 to vector<2x9xi32>
    %98 = arith.cmpi eq, %0, %97 : vector<2x9xi32>
    %c19 = arith.constant 19 : index
    %99 = memref.load %arg1[%c19] : memref<64xi32, #tpu.memory_space<smem>>
    %100 = vector.broadcast %99 : i32 to vector<2x9xi32>
    %101 = arith.select %98, %100, %96 : vector<2x9xi1>, vector<2x9xi32>
    %c20_i32 = arith.constant 20 : i32
    %102 = vector.broadcast %c20_i32 : i32 to vector<2x9xi32>
    %103 = arith.cmpi eq, %0, %102 : vector<2x9xi32>
    %c20 = arith.constant 20 : index
    %104 = memref.load %arg1[%c20] : memref<64xi32, #tpu.memory_space<smem>>
    %105 = vector.broadcast %104 : i32 to vector<2x9xi32>
    %106 = arith.select %103, %105, %101 : vector<2x9xi1>, vector<2x9xi32>
    %c21_i32 = arith.constant 21 : i32
    %107 = vector.broadcast %c21_i32 : i32 to vector<2x9xi32>
    %108 = arith.cmpi eq, %0, %107 : vector<2x9xi32>
    %c21 = arith.constant 21 : index
    %109 = memref.load %arg1[%c21] : memref<64xi32, #tpu.memory_space<smem>>
    %110 = vector.broadcast %109 : i32 to vector<2x9xi32>
    %111 = arith.select %108, %110, %106 : vector<2x9xi1>, vector<2x9xi32>
    %c22_i32 = arith.constant 22 : i32
    %112 = vector.broadcast %c22_i32 : i32 to vector<2x9xi32>
    %113 = arith.cmpi eq, %0, %112 : vector<2x9xi32>
    %c22 = arith.constant 22 : index
    %114 = memref.load %arg1[%c22] : memref<64xi32, #tpu.memory_space<smem>>
    %115 = vector.broadcast %114 : i32 to vector<2x9xi32>
    %116 = arith.select %113, %115, %111 : vector<2x9xi1>, vector<2x9xi32>
    %c23_i32 = arith.constant 23 : i32
    %117 = vector.broadcast %c23_i32 : i32 to vector<2x9xi32>
    %118 = arith.cmpi eq, %0, %117 : vector<2x9xi32>
    %c23 = arith.constant 23 : index
    %119 = memref.load %arg1[%c23] : memref<64xi32, #tpu.memory_space<smem>>
    %120 = vector.broadcast %119 : i32 to vector<2x9xi32>
    %121 = arith.select %118, %120, %116 : vector<2x9xi1>, vector<2x9xi32>
    %c24_i32 = arith.constant 24 : i32
    %122 = vector.broadcast %c24_i32 : i32 to vector<2x9xi32>
    %123 = arith.cmpi eq, %0, %122 : vector<2x9xi32>
    %c24 = arith.constant 24 : index
    %124 = memref.load %arg1[%c24] : memref<64xi32, #tpu.memory_space<smem>>
    %125 = vector.broadcast %124 : i32 to vector<2x9xi32>
    %126 = arith.select %123, %125, %121 : vector<2x9xi1>, vector<2x9xi32>
    %c25_i32 = arith.constant 25 : i32
    %127 = vector.broadcast %c25_i32 : i32 to vector<2x9xi32>
    %128 = arith.cmpi eq, %0, %127 : vector<2x9xi32>
    %c25 = arith.constant 25 : index
    %129 = memref.load %arg1[%c25] : memref<64xi32, #tpu.memory_space<smem>>
    %130 = vector.broadcast %129 : i32 to vector<2x9xi32>
    %131 = arith.select %128, %130, %126 : vector<2x9xi1>, vector<2x9xi32>
    %c26_i32 = arith.constant 26 : i32
    %132 = vector.broadcast %c26_i32 : i32 to vector<2x9xi32>
    %133 = arith.cmpi eq, %0, %132 : vector<2x9xi32>
    %c26 = arith.constant 26 : index
    %134 = memref.load %arg1[%c26] : memref<64xi32, #tpu.memory_space<smem>>
    %135 = vector.broadcast %134 : i32 to vector<2x9xi32>
    %136 = arith.select %133, %135, %131 : vector<2x9xi1>, vector<2x9xi32>
    %c27_i32 = arith.constant 27 : i32
    %137 = vector.broadcast %c27_i32 : i32 to vector<2x9xi32>
    %138 = arith.cmpi eq, %0, %137 : vector<2x9xi32>
    %c27 = arith.constant 27 : index
    %139 = memref.load %arg1[%c27] : memref<64xi32, #tpu.memory_space<smem>>
    %140 = vector.broadcast %139 : i32 to vector<2x9xi32>
    %141 = arith.select %138, %140, %136 : vector<2x9xi1>, vector<2x9xi32>
    %c28_i32 = arith.constant 28 : i32
    %142 = vector.broadcast %c28_i32 : i32 to vector<2x9xi32>
    %143 = arith.cmpi eq, %0, %142 : vector<2x9xi32>
    %c28 = arith.constant 28 : index
    %144 = memref.load %arg1[%c28] : memref<64xi32, #tpu.memory_space<smem>>
    %145 = vector.broadcast %144 : i32 to vector<2x9xi32>
    %146 = arith.select %143, %145, %141 : vector<2x9xi1>, vector<2x9xi32>
    %c29_i32 = arith.constant 29 : i32
    %147 = vector.broadcast %c29_i32 : i32 to vector<2x9xi32>
    %148 = arith.cmpi eq, %0, %147 : vector<2x9xi32>
    %c29 = arith.constant 29 : index
    %149 = memref.load %arg1[%c29] : memref<64xi32, #tpu.memory_space<smem>>
    %150 = vector.broadcast %149 : i32 to vector<2x9xi32>
    %151 = arith.select %148, %150, %146 : vector<2x9xi1>, vector<2x9xi32>
    %c30_i32 = arith.constant 30 : i32
    %152 = vector.broadcast %c30_i32 : i32 to vector<2x9xi32>
    %153 = arith.cmpi eq, %0, %152 : vector<2x9xi32>
    %c30 = arith.constant 30 : index
    %154 = memref.load %arg1[%c30] : memref<64xi32, #tpu.memory_space<smem>>
    %155 = vector.broadcast %154 : i32 to vector<2x9xi32>
    %156 = arith.select %153, %155, %151 : vector<2x9xi1>, vector<2x9xi32>
    %c31_i32 = arith.constant 31 : i32
    %157 = vector.broadcast %c31_i32 : i32 to vector<2x9xi32>
    %158 = arith.cmpi eq, %0, %157 : vector<2x9xi32>
    %c31 = arith.constant 31 : index
    %159 = memref.load %arg1[%c31] : memref<64xi32, #tpu.memory_space<smem>>
    %160 = vector.broadcast %159 : i32 to vector<2x9xi32>
    %161 = arith.select %158, %160, %156 : vector<2x9xi1>, vector<2x9xi32>
    %c32_i32 = arith.constant 32 : i32
    %162 = vector.broadcast %c32_i32 : i32 to vector<2x9xi32>
    %163 = arith.cmpi eq, %0, %162 : vector<2x9xi32>
    %c32 = arith.constant 32 : index
    %164 = memref.load %arg1[%c32] : memref<64xi32, #tpu.memory_space<smem>>
    %165 = vector.broadcast %164 : i32 to vector<2x9xi32>
    %166 = arith.select %163, %165, %161 : vector<2x9xi1>, vector<2x9xi32>
    %c33_i32 = arith.constant 33 : i32
    %167 = vector.broadcast %c33_i32 : i32 to vector<2x9xi32>
    %168 = arith.cmpi eq, %0, %167 : vector<2x9xi32>
    %c33 = arith.constant 33 : index
    %169 = memref.load %arg1[%c33] : memref<64xi32, #tpu.memory_space<smem>>
    %170 = vector.broadcast %169 : i32 to vector<2x9xi32>
    %171 = arith.select %168, %170, %166 : vector<2x9xi1>, vector<2x9xi32>
    %c34_i32 = arith.constant 34 : i32
    %172 = vector.broadcast %c34_i32 : i32 to vector<2x9xi32>
    %173 = arith.cmpi eq, %0, %172 : vector<2x9xi32>
    %c34 = arith.constant 34 : index
    %174 = memref.load %arg1[%c34] : memref<64xi32, #tpu.memory_space<smem>>
    %175 = vector.broadcast %174 : i32 to vector<2x9xi32>
    %176 = arith.select %173, %175, %171 : vector<2x9xi1>, vector<2x9xi32>
    %c35_i32 = arith.constant 35 : i32
    %177 = vector.broadcast %c35_i32 : i32 to vector<2x9xi32>
    %178 = arith.cmpi eq, %0, %177 : vector<2x9xi32>
    %c35 = arith.constant 35 : index
    %179 = memref.load %arg1[%c35] : memref<64xi32, #tpu.memory_space<smem>>
    %180 = vector.broadcast %179 : i32 to vector<2x9xi32>
    %181 = arith.select %178, %180, %176 : vector<2x9xi1>, vector<2x9xi32>
    %c36_i32 = arith.constant 36 : i32
    %182 = vector.broadcast %c36_i32 : i32 to vector<2x9xi32>
    %183 = arith.cmpi eq, %0, %182 : vector<2x9xi32>
    %c36 = arith.constant 36 : index
    %184 = memref.load %arg1[%c36] : memref<64xi32, #tpu.memory_space<smem>>
    %185 = vector.broadcast %184 : i32 to vector<2x9xi32>
    %186 = arith.select %183, %185, %181 : vector<2x9xi1>, vector<2x9xi32>
    %c37_i32 = arith.constant 37 : i32
    %187 = vector.broadcast %c37_i32 : i32 to vector<2x9xi32>
    %188 = arith.cmpi eq, %0, %187 : vector<2x9xi32>
    %c37 = arith.constant 37 : index
    %189 = memref.load %arg1[%c37] : memref<64xi32, #tpu.memory_space<smem>>
    %190 = vector.broadcast %189 : i32 to vector<2x9xi32>
    %191 = arith.select %188, %190, %186 : vector<2x9xi1>, vector<2x9xi32>
    %c38_i32 = arith.constant 38 : i32
    %192 = vector.broadcast %c38_i32 : i32 to vector<2x9xi32>
    %193 = arith.cmpi eq, %0, %192 : vector<2x9xi32>
    %c38 = arith.constant 38 : index
    %194 = memref.load %arg1[%c38] : memref<64xi32, #tpu.memory_space<smem>>
    %195 = vector.broadcast %194 : i32 to vector<2x9xi32>
    %196 = arith.select %193, %195, %191 : vector<2x9xi1>, vector<2x9xi32>
    %c39_i32 = arith.constant 39 : i32
    %197 = vector.broadcast %c39_i32 : i32 to vector<2x9xi32>
    %198 = arith.cmpi eq, %0, %197 : vector<2x9xi32>
    %c39 = arith.constant 39 : index
    %199 = memref.load %arg1[%c39] : memref<64xi32, #tpu.memory_space<smem>>
    %200 = vector.broadcast %199 : i32 to vector<2x9xi32>
    %201 = arith.select %198, %200, %196 : vector<2x9xi1>, vector<2x9xi32>
    %c40_i32 = arith.constant 40 : i32
    %202 = vector.broadcast %c40_i32 : i32 to vector<2x9xi32>
    %203 = arith.cmpi eq, %0, %202 : vector<2x9xi32>
    %c40 = arith.constant 40 : index
    %204 = memref.load %arg1[%c40] : memref<64xi32, #tpu.memory_space<smem>>
    %205 = vector.broadcast %204 : i32 to vector<2x9xi32>
    %206 = arith.select %203, %205, %201 : vector<2x9xi1>, vector<2x9xi32>
    %c41_i32 = arith.constant 41 : i32
    %207 = vector.broadcast %c41_i32 : i32 to vector<2x9xi32>
    %208 = arith.cmpi eq, %0, %207 : vector<2x9xi32>
    %c41 = arith.constant 41 : index
    %209 = memref.load %arg1[%c41] : memref<64xi32, #tpu.memory_space<smem>>
    %210 = vector.broadcast %209 : i32 to vector<2x9xi32>
    %211 = arith.select %208, %210, %206 : vector<2x9xi1>, vector<2x9xi32>
    %c42_i32 = arith.constant 42 : i32
    %212 = vector.broadcast %c42_i32 : i32 to vector<2x9xi32>
    %213 = arith.cmpi eq, %0, %212 : vector<2x9xi32>
    %c42 = arith.constant 42 : index
    %214 = memref.load %arg1[%c42] : memref<64xi32, #tpu.memory_space<smem>>
    %215 = vector.broadcast %214 : i32 to vector<2x9xi32>
    %216 = arith.select %213, %215, %211 : vector<2x9xi1>, vector<2x9xi32>
    %c43_i32 = arith.constant 43 : i32
    %217 = vector.broadcast %c43_i32 : i32 to vector<2x9xi32>
    %218 = arith.cmpi eq, %0, %217 : vector<2x9xi32>
    %c43 = arith.constant 43 : index
    %219 = memref.load %arg1[%c43] : memref<64xi32, #tpu.memory_space<smem>>
    %220 = vector.broadcast %219 : i32 to vector<2x9xi32>
    %221 = arith.select %218, %220, %216 : vector<2x9xi1>, vector<2x9xi32>
    %c44_i32 = arith.constant 44 : i32
    %222 = vector.broadcast %c44_i32 : i32 to vector<2x9xi32>
    %223 = arith.cmpi eq, %0, %222 : vector<2x9xi32>
    %c44 = arith.constant 44 : index
    %224 = memref.load %arg1[%c44] : memref<64xi32, #tpu.memory_space<smem>>
    %225 = vector.broadcast %224 : i32 to vector<2x9xi32>
    %226 = arith.select %223, %225, %221 : vector<2x9xi1>, vector<2x9xi32>
    %c45_i32 = arith.constant 45 : i32
    %227 = vector.broadcast %c45_i32 : i32 to vector<2x9xi32>
    %228 = arith.cmpi eq, %0, %227 : vector<2x9xi32>
    %c45 = arith.constant 45 : index
    %229 = memref.load %arg1[%c45] : memref<64xi32, #tpu.memory_space<smem>>
    %230 = vector.broadcast %229 : i32 to vector<2x9xi32>
    %231 = arith.select %228, %230, %226 : vector<2x9xi1>, vector<2x9xi32>
    %c46_i32 = arith.constant 46 : i32
    %232 = vector.broadcast %c46_i32 : i32 to vector<2x9xi32>
    %233 = arith.cmpi eq, %0, %232 : vector<2x9xi32>
    %c46 = arith.constant 46 : index
    %234 = memref.load %arg1[%c46] : memref<64xi32, #tpu.memory_space<smem>>
    %235 = vector.broadcast %234 : i32 to vector<2x9xi32>
    %236 = arith.select %233, %235, %231 : vector<2x9xi1>, vector<2x9xi32>
    %c47_i32 = arith.constant 47 : i32
    %237 = vector.broadcast %c47_i32 : i32 to vector<2x9xi32>
    %238 = arith.cmpi eq, %0, %237 : vector<2x9xi32>
    %c47 = arith.constant 47 : index
    %239 = memref.load %arg1[%c47] : memref<64xi32, #tpu.memory_space<smem>>
    %240 = vector.broadcast %239 : i32 to vector<2x9xi32>
    %241 = arith.select %238, %240, %236 : vector<2x9xi1>, vector<2x9xi32>
    %c48_i32 = arith.constant 48 : i32
    %242 = vector.broadcast %c48_i32 : i32 to vector<2x9xi32>
    %243 = arith.cmpi eq, %0, %242 : vector<2x9xi32>
    %c48 = arith.constant 48 : index
    %244 = memref.load %arg1[%c48] : memref<64xi32, #tpu.memory_space<smem>>
    %245 = vector.broadcast %244 : i32 to vector<2x9xi32>
    %246 = arith.select %243, %245, %241 : vector<2x9xi1>, vector<2x9xi32>
    %c49_i32 = arith.constant 49 : i32
    %247 = vector.broadcast %c49_i32 : i32 to vector<2x9xi32>
    %248 = arith.cmpi eq, %0, %247 : vector<2x9xi32>
    %c49 = arith.constant 49 : index
    %249 = memref.load %arg1[%c49] : memref<64xi32, #tpu.memory_space<smem>>
    %250 = vector.broadcast %249 : i32 to vector<2x9xi32>
    %251 = arith.select %248, %250, %246 : vector<2x9xi1>, vector<2x9xi32>
    %c50_i32 = arith.constant 50 : i32
    %252 = vector.broadcast %c50_i32 : i32 to vector<2x9xi32>
    %253 = arith.cmpi eq, %0, %252 : vector<2x9xi32>
    %c50 = arith.constant 50 : index
    %254 = memref.load %arg1[%c50] : memref<64xi32, #tpu.memory_space<smem>>
    %255 = vector.broadcast %254 : i32 to vector<2x9xi32>
    %256 = arith.select %253, %255, %251 : vector<2x9xi1>, vector<2x9xi32>
    %c51_i32 = arith.constant 51 : i32
    %257 = vector.broadcast %c51_i32 : i32 to vector<2x9xi32>
    %258 = arith.cmpi eq, %0, %257 : vector<2x9xi32>
    %c51 = arith.constant 51 : index
    %259 = memref.load %arg1[%c51] : memref<64xi32, #tpu.memory_space<smem>>
    %260 = vector.broadcast %259 : i32 to vector<2x9xi32>
    %261 = arith.select %258, %260, %256 : vector<2x9xi1>, vector<2x9xi32>
    %c52_i32 = arith.constant 52 : i32
    %262 = vector.broadcast %c52_i32 : i32 to vector<2x9xi32>
    %263 = arith.cmpi eq, %0, %262 : vector<2x9xi32>
    %c52 = arith.constant 52 : index
    %264 = memref.load %arg1[%c52] : memref<64xi32, #tpu.memory_space<smem>>
    %265 = vector.broadcast %264 : i32 to vector<2x9xi32>
    %266 = arith.select %263, %265, %261 : vector<2x9xi1>, vector<2x9xi32>
    %c53_i32 = arith.constant 53 : i32
    %267 = vector.broadcast %c53_i32 : i32 to vector<2x9xi32>
    %268 = arith.cmpi eq, %0, %267 : vector<2x9xi32>
    %c53 = arith.constant 53 : index
    %269 = memref.load %arg1[%c53] : memref<64xi32, #tpu.memory_space<smem>>
    %270 = vector.broadcast %269 : i32 to vector<2x9xi32>
    %271 = arith.select %268, %270, %266 : vector<2x9xi1>, vector<2x9xi32>
    %c54_i32 = arith.constant 54 : i32
    %272 = vector.broadcast %c54_i32 : i32 to vector<2x9xi32>
    %273 = arith.cmpi eq, %0, %272 : vector<2x9xi32>
    %c54 = arith.constant 54 : index
    %274 = memref.load %arg1[%c54] : memref<64xi32, #tpu.memory_space<smem>>
    %275 = vector.broadcast %274 : i32 to vector<2x9xi32>
    %276 = arith.select %273, %275, %271 : vector<2x9xi1>, vector<2x9xi32>
    %c55_i32 = arith.constant 55 : i32
    %277 = vector.broadcast %c55_i32 : i32 to vector<2x9xi32>
    %278 = arith.cmpi eq, %0, %277 : vector<2x9xi32>
    %c55 = arith.constant 55 : index
    %279 = memref.load %arg1[%c55] : memref<64xi32, #tpu.memory_space<smem>>
    %280 = vector.broadcast %279 : i32 to vector<2x9xi32>
    %281 = arith.select %278, %280, %276 : vector<2x9xi1>, vector<2x9xi32>
    %c56_i32 = arith.constant 56 : i32
    %282 = vector.broadcast %c56_i32 : i32 to vector<2x9xi32>
    %283 = arith.cmpi eq, %0, %282 : vector<2x9xi32>
    %c56 = arith.constant 56 : index
    %284 = memref.load %arg1[%c56] : memref<64xi32, #tpu.memory_space<smem>>
    %285 = vector.broadcast %284 : i32 to vector<2x9xi32>
    %286 = arith.select %283, %285, %281 : vector<2x9xi1>, vector<2x9xi32>
    %c57_i32 = arith.constant 57 : i32
    %287 = vector.broadcast %c57_i32 : i32 to vector<2x9xi32>
    %288 = arith.cmpi eq, %0, %287 : vector<2x9xi32>
    %c57 = arith.constant 57 : index
    %289 = memref.load %arg1[%c57] : memref<64xi32, #tpu.memory_space<smem>>
    %290 = vector.broadcast %289 : i32 to vector<2x9xi32>
    %291 = arith.select %288, %290, %286 : vector<2x9xi1>, vector<2x9xi32>
    %c58_i32 = arith.constant 58 : i32
    %292 = vector.broadcast %c58_i32 : i32 to vector<2x9xi32>
    %293 = arith.cmpi eq, %0, %292 : vector<2x9xi32>
    %c58 = arith.constant 58 : index
    %294 = memref.load %arg1[%c58] : memref<64xi32, #tpu.memory_space<smem>>
    %295 = vector.broadcast %294 : i32 to vector<2x9xi32>
    %296 = arith.select %293, %295, %291 : vector<2x9xi1>, vector<2x9xi32>
    %c59_i32 = arith.constant 59 : i32
    %297 = vector.broadcast %c59_i32 : i32 to vector<2x9xi32>
    %298 = arith.cmpi eq, %0, %297 : vector<2x9xi32>
    %c59 = arith.constant 59 : index
    %299 = memref.load %arg1[%c59] : memref<64xi32, #tpu.memory_space<smem>>
    %300 = vector.broadcast %299 : i32 to vector<2x9xi32>
    %301 = arith.select %298, %300, %296 : vector<2x9xi1>, vector<2x9xi32>
    %c60_i32 = arith.constant 60 : i32
    %302 = vector.broadcast %c60_i32 : i32 to vector<2x9xi32>
    %303 = arith.cmpi eq, %0, %302 : vector<2x9xi32>
    %c60 = arith.constant 60 : index
    %304 = memref.load %arg1[%c60] : memref<64xi32, #tpu.memory_space<smem>>
    %305 = vector.broadcast %304 : i32 to vector<2x9xi32>
    %306 = arith.select %303, %305, %301 : vector<2x9xi1>, vector<2x9xi32>
    %c61_i32 = arith.constant 61 : i32
    %307 = vector.broadcast %c61_i32 : i32 to vector<2x9xi32>
    %308 = arith.cmpi eq, %0, %307 : vector<2x9xi32>
    %c61 = arith.constant 61 : index
    %309 = memref.load %arg1[%c61] : memref<64xi32, #tpu.memory_space<smem>>
    %310 = vector.broadcast %309 : i32 to vector<2x9xi32>
    %311 = arith.select %308, %310, %306 : vector<2x9xi1>, vector<2x9xi32>
    %c62_i32 = arith.constant 62 : i32
    %312 = vector.broadcast %c62_i32 : i32 to vector<2x9xi32>
    %313 = arith.cmpi eq, %0, %312 : vector<2x9xi32>
    %c62 = arith.constant 62 : index
    %314 = memref.load %arg1[%c62] : memref<64xi32, #tpu.memory_space<smem>>
    %315 = vector.broadcast %314 : i32 to vector<2x9xi32>
    %316 = arith.select %313, %315, %311 : vector<2x9xi1>, vector<2x9xi32>
    %c63_i32 = arith.constant 63 : i32
    %317 = vector.broadcast %c63_i32 : i32 to vector<2x9xi32>
    %318 = arith.cmpi eq, %0, %317 : vector<2x9xi32>
    %c63 = arith.constant 63 : index
    %319 = memref.load %arg1[%c63] : memref<64xi32, #tpu.memory_space<smem>>
    %320 = vector.broadcast %319 : i32 to vector<2x9xi32>
    %321 = arith.select %318, %320, %316 : vector<2x9xi1>, vector<2x9xi32>
    %c0_i32_3 = arith.constant 0 : i32
    %322 = vector.broadcast %c0_i32_3 : i32 to vector<2x1xi32>
    %c2_i32_4 = arith.constant 2 : i32
    %323 = vector.broadcast %c2_i32_4 : i32 to vector<2x1xi32>
    %324 = vector.extract_strided_slice %321 {offsets = [0, 0], sizes = [2, 8], strides = [1, 1]} : vector<2x9xi32> to vector<2x8xi32>
    %325 = tpu.concatenate %322, %324, %323 in 1 : vector<2x1xi32>, vector<2x8xi32>, vector<2x1xi32> -> vector<2x10xi32>
    %c0_5 = arith.constant 0 : index
    %c0_6 = arith.constant 0 : index
    %326 = vector.load %arg3[%c0_5, %c0_6] : memref<2x10xi32, #tpu.memory_space<vmem>>, vector<2x10xi32>
    tpu.vector_store %arg3[%c0_5, %c0_6], %325 {strides = array<i32>} : memref<2x10xi32, #tpu.memory_space<vmem>>, vector<2x10xi32>,
    %327 = vector.extract_strided_slice %321 {offsets = [0, 1], sizes = [2, 8], strides = [1, 1]} : vector<2x9xi32> to vector<2x8xi32>
    %328 = tpu.concatenate %322, %327, %323 in 1 : vector<2x1xi32>, vector<2x8xi32>, vector<2x1xi32> -> vector<2x10xi32>
    %c0_7 = arith.constant 0 : index
    %c0_8 = arith.constant 0 : index
    %329 = vector.load %arg4[%c0_7, %c0_8] : memref<2x10xi32, #tpu.memory_space<vmem>>, vector<2x10xi32>
    tpu.vector_store %arg4[%c0_7, %c0_8], %328 {strides = array<i32>} : memref<2x10xi32, #tpu.memory_space<vmem>>, vector<2x10xi32>,
    return
  }
  func.func @transform_0(%arg0: i32, %arg1: memref<64xi32, #tpu.memory_space<smem>>) -> (i32, i32) {
    %c0_i32 = arith.constant 0 : i32
    %c0_i32_0 = arith.constant 0 : i32
    return %arg0, %c0_i32 : i32, i32
  }
  func.func @transform_1(%arg0: i32, %arg1: memref<64xi32, #tpu.memory_space<smem>>) -> (i32, i32) {
    %c0_i32 = arith.constant 0 : i32
    %c0_i32_0 = arith.constant 0 : i32
    return %arg0, %c0_i32 : i32, i32
  }
  func.func @transform_2(%arg0: i32, %arg1: memref<64xi32, #tpu.memory_space<smem>>) -> (i32, i32) {
    %c0_i32 = arith.constant 0 : i32
    %c0_i32_0 = arith.constant 0 : i32
    return %arg0, %c0_i32 : i32, i32
  }
}

</mosaic_0001>

<llo_original>
// kernel: tpu_custom_call.1
$region0: #{tpu_custom_call.1}
  #allocation0 [shape = 'u32[]', space=smem, size = 0x4, offset = 0x4, fixed_abs, tag = 'smem constant byte address 0x4 - core index']
  #allocation1 [shape = 'u32[144,128]{1,0:T(1,128)}', space=vmem, size = 0x12000, scoped, tag = 'internal scratch']
  %s0 = inlined_call_operand.hbm [shape: s32[1,64], index: 0, kind: input, shape index: {}]
  %s1 = inlined_call_operand.vmem [shape: s32[2,16], index: 1, kind: input, shape index: {}]
  %s2 = inlined_call_operand.hbm [shape: s32[2,10], index: 2, kind: output, shape index: {0}]
  %s3 = inlined_call_operand.hbm [shape: s32[2,10], index: 3, kind: output, shape index: {1}]
  %4 = xla_tuple %s2, %s3
  %s5 = sld [smem:[#allocation0]]
  $region30: #{tpu_custom_call.1} parent=0
    _
  %s7 = ssub.s32 1, %s5
  %s8 = scalar_select 0, %s7, %s5
  $region1: #{tpu_custom_call.1} parent=0
    #allocation2 [shape = 'u8[512]{0}', space=vmem, size = 0x400, scoped, tag = 'input window, operand 0, single buffered']
    #allocation3 [shape = 's32[1]{0}', space=sflag, size = 0x4, scoped, tag = 'scoped memory for tpu_custom_call.1']
    #allocation4 [shape = 's32[1]{0}', space=sflag, size = 0x4, scoped, tag = 'scoped memory for tpu_custom_call.1']
    #allocation5 [shape = 'u8[1024]{0}', space=vmem, size = 0x400, scoped, tag = 'output window, operand 0, single buffered']
    #allocation6 [shape = 'u8[1024]{0}', space=vmem, size = 0x400, scoped, tag = 'output window, operand 1, single buffered']
    #allocation7 [shape = 's32[1]{0}', space=sflag, size = 0x4, scoped, tag = 'scoped memory for tpu_custom_call.1']
    %9 = vsyncpa [#allocation3], 0
    %10 = vsyncpa [#allocation4], 0
    %11 = vsyncpa [#allocation7], 0
    // Predicated region
    $region2: #{tpu_custom_call.1} parent=1 // pred_check
      _
    $region3: #{tpu_custom_call.1} parent=1 // pred_check_branch
      %13 = sbr.rel (0) target = $region5
    $region4: #{tpu_custom_call.1} parent=1 // pred_region
      %s15 = ssub.s32 16, 16
      %16 = vsyncadd [#allocation3], %s15
      %s18 = sshll.u32 [#allocation2], 4
      %s19 = int_to_ptr.vmem [resolvable:$true] %s18
      %21 = dma.hbm_to_vmem [thread:$0]  %s0, 16, %s19, [#allocation3]
    $region5: #{tpu_custom_call.1} parent=1 // pred_fallthru
      _
    // Predicated region
    $region6: #{tpu_custom_call.1} parent=1 // pred_check
      _
    $region7: #{tpu_custom_call.1} parent=1 // pred_check_branch
      %23 = sbr.rel (0) target = $region9
    $region8: #{tpu_custom_call.1} parent=1 // pred_region
      _
    $region9: #{tpu_custom_call.1} parent=1 // pred_fallthru
      _
    // Predicated region
    $region10: #{tpu_custom_call.1} parent=1 // pred_check
      _
    $region11: #{tpu_custom_call.1} parent=1 // pred_check_branch
      %25 = sbr.rel (0) target = $region13
    $region12: #{tpu_custom_call.1} parent=1 // pred_region
      %26 = dma.done [#allocation3], 16
    $region13: #{tpu_custom_call.1} parent=1 // pred_fallthru
      _
    %v27 = vld [vmem:[%s1] sm:$0x3]
    %vm28 = vcmp.gt.s32.totalorder %v27, 0
    %v29 = vsel %vm28, %v27, 0
    %vm30 = vcmp.lt.s32.totalorder %v29, 63
    %v31 = vsel %vm30, %v29, 63
    %vm32 = vcmask 72704
    %v33 = vsel %vm32, %v31, 0
    %v34 = vld [vmem:[#allocation2] sm:$0x1]
    %v35 = vlaneseq
    %v36 = vshrl.u32 %v35, 7
    %v37 = vsub.s32 0, %v36
    %v38 = vrot.slane %v34, %v37
    %39 = vset.pattern.permute.xlu0 %v33
    %40 = vperm.xlu0 %39, %v38
    %v41 = vpop.permute.xlu0 %40
    %42 = vrot.lane.b32.xlu0 %v41, 1
    %v43 = vpop.permute.xlu0 %42
    %vm44 = vcmask 7168
    %v45 = vsel %vm44, 0, %v43
    %v46 = vsel %vm32, %v45, 2
    %vm47 = vcmask 74752
    %48 = vst.msk [vmem:[#allocation5] sm:$0x3] %vm47, %v46
    %v49 = vsel %vm44, 0, %v41
    %v50 = vsel %vm32, %v49, 2
    %51 = vst.msk [vmem:[#allocation6] sm:$0x3] %vm47, %v50
    // Predicated region
    $region14: #{tpu_custom_call.1} parent=1 // pred_check
      _
    $region15: #{tpu_custom_call.1} parent=1 // pred_check_branch
      %53 = sbr.rel (0) target = $region17
    $region16: #{tpu_custom_call.1} parent=1 // pred_region
      %s55 = ssub.s32 32, 32
      %56 = vsyncadd [#allocation4], %s55
      %s58 = sshll.u32 [#allocation5], 4
      %s59 = int_to_ptr.vmem [resolvable:$true] %s58
      %61 = dma.vmem_to_hbm [thread:$0]  %s59, 32, %s2, [#allocation4]
    $region17: #{tpu_custom_call.1} parent=1 // pred_fallthru
      _
    // Predicated region
    $region18: #{tpu_custom_call.1} parent=1 // pred_check
      _
    $region19: #{tpu_custom_call.1} parent=1 // pred_check_branch
      %63 = sbr.rel (0) target = $region21
    $region20: #{tpu_custom_call.1} parent=1 // pred_region
      %s65 = ssub.s32 32, 32
      %66 = vsyncadd [#allocation7], %s65
      %s68 = sshll.u32 [#allocation6], 4
      %s69 = int_to_ptr.vmem [resolvable:$true] %s68
      %71 = dma.vmem_to_hbm [thread:$0]  %s69, 32, %s3, [#allocation7]
    $region21: #{tpu_custom_call.1} parent=1 // pred_fallthru
      _
    // Predicated region
    $region22: #{tpu_custom_call.1} parent=1 // pred_check
      _
    $region23: #{tpu_custom_call.1} parent=1 // pred_check_branch
      %73 = sbr.rel (0) target = $region25
    $region24: #{tpu_custom_call.1} parent=1 // pred_region
      %74 = dma.done [#allocation4], 32
    $region25: #{tpu_custom_call.1} parent=1 // pred_fallthru
      _
    // Predicated region
    $region26: #{tpu_custom_call.1} parent=1 // pred_check
      _
    $region27: #{tpu_custom_call.1} parent=1 // pred_check_branch
      %76 = sbr.rel (0) target = $region29
    $region28: #{tpu_custom_call.1} parent=1 // pred_region
      %77 = dma.done [#allocation7], 32
    $region29: #{tpu_custom_call.1} parent=1 // pred_fallthru
      _
    %78 = vsyncpa [#allocation3], 1
    %79 = vsyncpa [#allocation4], 1
    %80 = vsyncpa [#allocation7], 1

// kernel: tpu_custom_call.1
$region0: #{tpu_custom_call.1}
  #allocation0 [shape = 'u32[]', space=smem, size = 0x4, offset = 0x4, fixed_abs, tag = 'smem constant byte address 0x4 - core index']
  #allocation1 [shape = 'u32[144,128]{1,0:T(1,128)}', space=vmem, size = 0x12000, scoped, tag = 'internal scratch']
  #allocation2 [shape = 's32[1]{0}', space=sflag, size = 0x4, scoped, tag = 'scoped memory for tpu_custom_call.1']
  #allocation3 [shape = 'u8[512]{0}', space=smem, size = 0x200, scoped, tag = 'prefetched SMEM operand 0']
  %s0 = inlined_call_operand.hbm [shape: s32[64], index: 0, kind: input, shape index: {}]
  %s1 = inlined_call_operand.vmem [shape: s32[2,16], index: 1, kind: input, shape index: {}]
  %s2 = inlined_call_operand.hbm [shape: s32[2,10], index: 2, kind: output, shape index: {0}]
  %s3 = inlined_call_operand.hbm [shape: s32[2,10], index: 3, kind: output, shape index: {1}]
  %4 = xla_tuple %s2, %s3
  %s5 = sld [smem:[#allocation0]]
  $region22: #{tpu_custom_call.1} parent=0
    _
  %s7 = ssub.s32 1, %s5
  %s8 = scalar_select 0, %s7, %s5
  %10 = dma.hbm_to_smem %s0, 16, [#allocation3], [#allocation2]
  %11 = dma.done [#allocation2], 16
  %12 = sfence
  $region1: #{tpu_custom_call.1} parent=0
    #allocation4 [shape = 'u8[1024]{0}', space=vmem, size = 0x400, scoped, tag = 'output window, operand 0, single buffered']
    #allocation5 [shape = 's32[1]{0}', space=sflag, size = 0x4, scoped, tag = 'scoped memory for tpu_custom_call.1']
    #allocation6 [shape = 'u8[1024]{0}', space=vmem, size = 0x400, scoped, tag = 'output window, operand 1, single buffered']
    #allocation7 [shape = 's32[1]{0}', space=sflag, size = 0x4, scoped, tag = 'scoped memory for tpu_custom_call.1']
    %13 = vsyncpa [#allocation5], 0
    %14 = vsyncpa [#allocation7], 0
    // Predicated region
    $region2: #{tpu_custom_call.1} parent=1 // pred_check
      _
    $region3: #{tpu_custom_call.1} parent=1 // pred_check_branch
      %16 = sbr.rel (0) target = $region5
    $region4: #{tpu_custom_call.1} parent=1 // pred_region
      _
    $region5: #{tpu_custom_call.1} parent=1 // pred_fallthru
      _
    %v17 = vld [vmem:[%s1] sm:$0x3]
    %vm18 = vcmp.eq.s32.totalorder %v17, 0
    %s19 = sld [smem:[#allocation3]]
    %v20 = vstv %s19
    %v21 = vsel %vm18, %v20, 0
    %vm22 = vcmp.eq.s32.totalorder %v17, 1
    %s23 = sld [smem:[#allocation3 + $0x1]]
    %v24 = vstv %s23
    %v25 = vsel %vm22, %v24, %v21
    %vm26 = vcmp.eq.s32.totalorder %v17, 2
    %s27 = sld [smem:[#allocation3 + $0x2]]
    %v28 = vstv %s27
    %v29 = vsel %vm26, %v28, %v25
    %vm30 = vcmp.eq.s32.totalorder %v17, 3
    %s31 = sld [smem:[#allocation3 + $0x3]]
    %v32 = vstv %s31
    %v33 = vsel %vm30, %v32, %v29
    %vm34 = vcmp.eq.s32.totalorder %v17, 4
    %s35 = sld [smem:[#allocation3 + $0x4]]
    %v36 = vstv %s35
    %v37 = vsel %vm34, %v36, %v33
    %vm38 = vcmp.eq.s32.totalorder %v17, 5
    %s39 = sld [smem:[#allocation3 + $0x5]]
    %v40 = vstv %s39
    %v41 = vsel %vm38, %v40, %v37
    %vm42 = vcmp.eq.s32.totalorder %v17, 6
    %s43 = sld [smem:[#allocation3 + $0x6]]
    %v44 = vstv %s43
    %v45 = vsel %vm42, %v44, %v41
    %vm46 = vcmp.eq.s32.totalorder %v17, 7
    %s47 = sld [smem:[#allocation3 + $0x7]]
    %v48 = vstv %s47
    %v49 = vsel %vm46, %v48, %v45
    %vm50 = vcmp.eq.s32.totalorder %v17, 8
    %s51 = sld [smem:[#allocation3 + $0x8]]
    %v52 = vstv %s51
    %v53 = vsel %vm50, %v52, %v49
    %vm54 = vcmp.eq.s32.totalorder %v17, 9
    %s55 = sld [smem:[#allocation3 + $0x9]]
    %v56 = vstv %s55
    %v57 = vsel %vm54, %v56, %v53
    %vm58 = vcmp.eq.s32.totalorder %v17, 10
    %s59 = sld [smem:[#allocation3 + $0xa]]
    %v60 = vstv %s59
    %v61 = vsel %vm58, %v60, %v57
    %vm62 = vcmp.eq.s32.totalorder %v17, 11
    %s63 = sld [smem:[#allocation3 + $0xb]]
    %v64 = vstv %s63
    %v65 = vsel %vm62, %v64, %v61
    %vm66 = vcmp.eq.s32.totalorder %v17, 12
    %s67 = sld [smem:[#allocation3 + $0xc]]
    %v68 = vstv %s67
    %v69 = vsel %vm66, %v68, %v65
    %vm70 = vcmp.eq.s32.totalorder %v17, 13
    %s71 = sld [smem:[#allocation3 + $0xd]]
    %v72 = vstv %s71
    %v73 = vsel %vm70, %v72, %v69
    %vm74 = vcmp.eq.s32.totalorder %v17, 14
    %s75 = sld [smem:[#allocation3 + $0xe]]
    %v76 = vstv %s75
    %v77 = vsel %vm74, %v76, %v73
    %vm78 = vcmp.eq.s32.totalorder %v17, 15
    %s79 = sld [smem:[#allocation3 + $0xf]]
    %v80 = vstv %s79
    %v81 = vsel %vm78, %v80, %v77
    %vm82 = vcmp.eq.s32.totalorder %v17, 16
    %s83 = sld [smem:[#allocation3 + $0x10]]
    %v84 = vstv %s83
    %v85 = vsel %vm82, %v84, %v81
    %vm86 = vcmp.eq.s32.totalorder %v17, 17
    %s87 = sld [smem:[#allocation3 + $0x11]]
    %v88 = vstv %s87
    %v89 = vsel %vm86, %v88, %v85
    %vm90 = vcmp.eq.s32.totalorder %v17, 18
    %s91 = sld [smem:[#allocation3 + $0x12]]
    %v92 = vstv %s91
    %v93 = vsel %vm90, %v92, %v89
    %vm94 = vcmp.eq.s32.totalorder %v17, 19
    %s95 = sld [smem:[#allocation3 + $0x13]]
    %v96 = vstv %s95
    %v97 = vsel %vm94, %v96, %v93
    %vm98 = vcmp.eq.s32.totalorder %v17, 20
    %s99 = sld [smem:[#allocation3 + $0x14]]
    %v100 = vstv %s99
    %v101 = vsel %vm98, %v100, %v97
    %vm102 = vcmp.eq.s32.totalorder %v17, 21
    %s103 = sld [smem:[#allocation3 + $0x15]]
    %v104 = vstv %s103
    %v105 = vsel %vm102, %v104, %v101
    %vm106 = vcmp.eq.s32.totalorder %v17, 22
    %s107 = sld [smem:[#allocation3 + $0x16]]
    %v108 = vstv %s107
    %v109 = vsel %vm106, %v108, %v105
    %vm110 = vcmp.eq.s32.totalorder %v17, 23
    %s111 = sld [smem:[#allocation3 + $0x17]]
    %v112 = vstv %s111
    %v113 = vsel %vm110, %v112, %v109
    %vm114 = vcmp.eq.s32.totalorder %v17, 24
    %s115 = sld [smem:[#allocation3 + $0x18]]
    %v116 = vstv %s115
    %v117 = vsel %vm114, %v116, %v113
    %vm118 = vcmp.eq.s32.totalorder %v17, 25
    %s119 = sld [smem:[#allocation3 + $0x19]]
    %v120 = vstv %s119
    %v121 = vsel %vm118, %v120, %v117
    %vm122 = vcmp.eq.s32.totalorder %v17, 26
    %s123 = sld [smem:[#allocation3 + $0x1a]]
    %v124 = vstv %s123
    %v125 = vsel %vm122, %v124, %v121
    %vm126 = vcmp.eq.s32.totalorder %v17, 27
    %s127 = sld [smem:[#allocation3 + $0x1b]]
    %v128 = vstv %s127
    %v129 = vsel %vm126, %v128, %v125
    %vm130 = vcmp.eq.s32.totalorder %v17, 28
    %s131 = sld [smem:[#allocation3 + $0x1c]]
    %v132 = vstv %s131
    %v133 = vsel %vm130, %v132, %v129
    %vm134 = vcmp.eq.s32.totalorder %v17, 29
    %s135 = sld [smem:[#allocation3 + $0x1d]]
    %v136 = vstv %s135
    %v137 = vsel %vm134, %v136, %v133
    %vm138 = vcmp.eq.s32.totalorder %v17, 30
    %s139 = sld [smem:[#allocation3 + $0x1e]]
    %v140 = vstv %s139
    %v141 = vsel %vm138, %v140, %v137
    %vm142 = vcmp.eq.s32.totalorder %v17, 31
    %s143 = sld [smem:[#allocation3 + $0x1f]]
    %v144 = vstv %s143
    %v145 = vsel %vm142, %v144, %v141
    %vm146 = vcmp.eq.s32.totalorder %v17, 32
    %s147 = sld [smem:[#allocation3 + $0x20]]
    %v148 = vstv %s147
    %v149 = vsel %vm146, %v148, %v145
    %vm150 = vcmp.eq.s32.totalorder %v17, 33
    %s151 = sld [smem:[#allocation3 + $0x21]]
    %v152 = vstv %s151
    %v153 = vsel %vm150, %v152, %v149
    %vm154 = vcmp.eq.s32.totalorder %v17, 34
    %s155 = sld [smem:[#allocation3 + $0x22]]
    %v156 = vstv %s155
    %v157 = vsel %vm154, %v156, %v153
    %vm158 = vcmp.eq.s32.totalorder %v17, 35
    %s159 = sld [smem:[#allocation3 + $0x23]]
    %v160 = vstv %s159
    %v161 = vsel %vm158, %v160, %v157
    %vm162 = vcmp.eq.s32.totalorder %v17, 36
    %s163 = sld [smem:[#allocation3 + $0x24]]
    %v164 = vstv %s163
    %v165 = vsel %vm162, %v164, %v161
    %vm166 = vcmp.eq.s32.totalorder %v17, 37
    %s167 = sld [smem:[#allocation3 + $0x25]]
    %v168 = vstv %s167
    %v169 = vsel %vm166, %v168, %v165
    %vm170 = vcmp.eq.s32.totalorder %v17, 38
    %s171 = sld [smem:[#allocation3 + $0x26]]
    %v172 = vstv %s171
    %v173 = vsel %vm170, %v172, %v169
    %vm174 = vcmp.eq.s32.totalorder %v17, 39
    %s175 = sld [smem:[#allocation3 + $0x27]]
    %v176 = vstv %s175
    %v177 = vsel %vm174, %v176, %v173
    %vm178 = vcmp.eq.s32.totalorder %v17, 40
    %s179 = sld [smem:[#allocation3 + $0x28]]
    %v180 = vstv %s179
    %v181 = vsel %vm178, %v180, %v177
    %vm182 = vcmp.eq.s32.totalorder %v17, 41
    %s183 = sld [smem:[#allocation3 + $0x29]]
    %v184 = vstv %s183
    %v185 = vsel %vm182, %v184, %v181
    %vm186 = vcmp.eq.s32.totalorder %v17, 42
    %s187 = sld [smem:[#allocation3 + $0x2a]]
    %v188 = vstv %s187
    %v189 = vsel %vm186, %v188, %v185
    %vm190 = vcmp.eq.s32.totalorder %v17, 43
    %s191 = sld [smem:[#allocation3 + $0x2b]]
    %v192 = vstv %s191
    %v193 = vsel %vm190, %v192, %v189
    %vm194 = vcmp.eq.s32.totalorder %v17, 44
    %s195 = sld [smem:[#allocation3 + $0x2c]]
    %v196 = vstv %s195
    %v197 = vsel %vm194, %v196, %v193
    %vm198 = vcmp.eq.s32.totalorder %v17, 45
    %s199 = sld [smem:[#allocation3 + $0x2d]]
    %v200 = vstv %s199
    %v201 = vsel %vm198, %v200, %v197
    %vm202 = vcmp.eq.s32.totalorder %v17, 46
    %s203 = sld [smem:[#allocation3 + $0x2e]]
    %v204 = vstv %s203
    %v205 = vsel %vm202, %v204, %v201
    %vm206 = vcmp.eq.s32.totalorder %v17, 47
    %s207 = sld [smem:[#allocation3 + $0x2f]]
    %v208 = vstv %s207
    %v209 = vsel %vm206, %v208, %v205
    %vm210 = vcmp.eq.s32.totalorder %v17, 48
    %s211 = sld [smem:[#allocation3 + $0x30]]
    %v212 = vstv %s211
    %v213 = vsel %vm210, %v212, %v209
    %vm214 = vcmp.eq.s32.totalorder %v17, 49
    %s215 = sld [smem:[#allocation3 + $0x31]]
    %v216 = vstv %s215
    %v217 = vsel %vm214, %v216, %v213
    %vm218 = vcmp.eq.s32.totalorder %v17, 50
    %s219 = sld [smem:[#allocation3 + $0x32]]
    %v220 = vstv %s219
    %v221 = vsel %vm218, %v220, %v217
    %vm222 = vcmp.eq.s32.totalorder %v17, 51
    %s223 = sld [smem:[#allocation3 + $0x33]]
    %v224 = vstv %s223
    %v225 = vsel %vm222, %v224, %v221
    %vm226 = vcmp.eq.s32.totalorder %v17, 52
    %s227 = sld [smem:[#allocation3 + $0x34]]
    %v228 = vstv %s227
    %v229 = vsel %vm226, %v228, %v225
    %vm230 = vcmp.eq.s32.totalorder %v17, 53
    %s231 = sld [smem:[#allocation3 + $0x35]]
    %v232 = vstv %s231
    %v233 = vsel %vm230, %v232, %v229
    %vm234 = vcmp.eq.s32.totalorder %v17, 54
    %s235 = sld [smem:[#allocation3 + $0x36]]
    %v236 = vstv %s235
    %v237 = vsel %vm234, %v236, %v233
    %vm238 = vcmp.eq.s32.totalorder %v17, 55
    %s239 = sld [smem:[#allocation3 + $0x37]]
    %v240 = vstv %s239
    %v241 = vsel %vm238, %v240, %v237
    %vm242 = vcmp.eq.s32.totalorder %v17, 56
    %s243 = sld [smem:[#allocation3 + $0x38]]
    %v244 = vstv %s243
    %v245 = vsel %vm242, %v244, %v241
    %vm246 = vcmp.eq.s32.totalorder %v17, 57
    %s247 = sld [smem:[#allocation3 + $0x39]]
    %v248 = vstv %s247
    %v249 = vsel %vm246, %v248, %v245
    %vm250 = vcmp.eq.s32.totalorder %v17, 58
    %s251 = sld [smem:[#allocation3 + $0x3a]]
    %v252 = vstv %s251
    %v253 = vsel %vm250, %v252, %v249
    %vm254 = vcmp.eq.s32.totalorder %v17, 59
    %s255 = sld [smem:[#allocation3 + $0x3b]]
    %v256 = vstv %s255
    %v257 = vsel %vm254, %v256, %v253
    %vm258 = vcmp.eq.s32.totalorder %v17, 60
    %s259 = sld [smem:[#allocation3 + $0x3c]]
    %v260 = vstv %s259
    %v261 = vsel %vm258, %v260, %v257
    %vm262 = vcmp.eq.s32.totalorder %v17, 61
    %s263 = sld [smem:[#allocation3 + $0x3d]]
    %v264 = vstv %s263
    %v265 = vsel %vm262, %v264, %v261
    %vm266 = vcmp.eq.s32.totalorder %v17, 62
    %s267 = sld [smem:[#allocation3 + $0x3e]]
    %v268 = vstv %s267
    %v269 = vsel %vm266, %v268, %v265
    %vm270 = vcmp.eq.s32.totalorder %v17, 63
    %s271 = sld [smem:[#allocation3 + $0x3f]]
    %v272 = vstv %s271
    %v273 = vsel %vm270, %v272, %v269
    %274 = vrot.lane.b32.xlu0 %v273, 1
    %v275 = vpop.permute.xlu0 %274
    %vm276 = vcmask 7168
    %v277 = vsel %vm276, 0, %v275
    %vm278 = vcmask 72704
    %v279 = vsel %vm278, %v277, 2
    %vm280 = vcmask 74752
    %281 = vst.msk [vmem:[#allocation4] sm:$0x3] %vm280, %v279
    %v282 = vsel %vm276, 0, %v273
    %v283 = vsel %vm278, %v282, 2
    %284 = vst.msk [vmem:[#allocation6] sm:$0x3] %vm280, %v283
    // Predicated region
    $region6: #{tpu_custom_call.1} parent=1 // pred_check
      _
    $region7: #{tpu_custom_call.1} parent=1 // pred_check_branch
      %286 = sbr.rel (0) target = $region9
    $region8: #{tpu_custom_call.1} parent=1 // pred_region
      %s288 = ssub.s32 32, 32
      %289 = vsyncadd [#allocation5], %s288
      %s291 = sshll.u32 [#allocation4], 4
      %s292 = int_to_ptr.vmem [resolvable:$true] %s291
      %294 = dma.vmem_to_hbm [thread:$0]  %s292, 32, %s2, [#allocation5]
    $region9: #{tpu_custom_call.1} parent=1 // pred_fallthru
      _
    // Predicated region
    $region10: #{tpu_custom_call.1} parent=1 // pred_check
      _
    $region11: #{tpu_custom_call.1} parent=1 // pred_check_branch
      %296 = sbr.rel (0) target = $region13
    $region12: #{tpu_custom_call.1} parent=1 // pred_region
      %s298 = ssub.s32 32, 32
      %299 = vsyncadd [#allocation7], %s298
      %s301 = sshll.u32 [#allocation6], 4
      %s302 = int_to_ptr.vmem [resolvable:$true] %s301
      %304 = dma.vmem_to_hbm [thread:$0]  %s302, 32, %s3, [#allocation7]
    $region13: #{tpu_custom_call.1} parent=1 // pred_fallthru
      _
    // Predicated region
    $region14: #{tpu_custom_call.1} parent=1 // pred_check
      _
    $region15: #{tpu_custom_call.1} parent=1 // pred_check_branch
      %306 = sbr.rel (0) target = $region17
    $region16: #{tpu_custom_call.1} parent=1 // pred_region
      %307 = dma.done [#allocation5], 32
    $region17: #{tpu_custom_call.1} parent=1 // pred_fallthru
      _
    // Predicated region
    $region18: #{tpu_custom_call.1} parent=1 // pred_check
      _
    $region19: #{tpu_custom_call.1} parent=1 // pred_check_branch
      %309 = sbr.rel (0) target = $region21
    $region20: #{tpu_custom_call.1} parent=1 // pred_region
      %310 = dma.done [#allocation7], 32
    $region21: #{tpu_custom_call.1} parent=1 // pred_fallthru
      _
    %311 = vsyncpa [#allocation5], 1
    %312 = vsyncpa [#allocation7], 1

</llo_original>
